<compile_context>
chip_gen: v6e
topology: v6e:2x2x1
jax: 0.10.0
libtpu: 0.0.40
codegen_flags: <defaults>
</compile_context>

<pallas_src>
import functools

import jax
import jax.numpy as jnp
from jax import lax
from jax.experimental import pallas as pl
from jax.experimental.pallas import tpu as pltpu

_MAX_TILE_ROWS = 1024  # 1024 rows x 128 lanes x 8 comps x 4 B = 4 MiB f32 input block


def _round_up(x, m):
    return ((x + m - 1) // m) * m


# ---------------------------------------------------------------------------
# Kernel bodies
# ---------------------------------------------------------------------------
def _box_loss(box_ref, *, loss_type):
    """box_ref: (8, TILE_R, 128) -- planes 0..3 pred cx,cy,w,h ; 4..7 target."""
    f32 = jnp.float32
    p_cx = box_ref[0].astype(f32)
    p_cy = box_ref[1].astype(f32)
    p_w = box_ref[2].astype(f32)
    p_h = box_ref[3].astype(f32)
    t_cx = box_ref[4].astype(f32)
    t_cy = box_ref[5].astype(f32)
    t_w = box_ref[6].astype(f32)
    t_h = box_ref[7].astype(f32)

    # cxcywh -> x0 y0 x1 y1
    p_hw = p_w * 0.5
    p_hh = p_h * 0.5
    t_hw = t_w * 0.5
    t_hh = t_h * 0.5
    p_x0 = p_cx - p_hw
    p_y0 = p_cy - p_hh
    p_x1 = p_cx + p_hw
    p_y1 = p_cy + p_hh
    t_x0 = t_cx - t_hw
    t_y0 = t_cy - t_hh
    t_x1 = t_cx + t_hw
    t_y1 = t_cy + t_hh

    area_p = (p_x1 - p_x0) * (p_y1 - p_y0)
    area_t = (t_x1 - t_x0) * (t_y1 - t_y0)

    lu_x = jnp.maximum(p_x0, t_x0)
    lu_y = jnp.maximum(p_y0, t_y0)
    rd_x = jnp.minimum(p_x1, t_x1)
    rd_y = jnp.minimum(p_y1, t_y1)

    inter_area = jnp.maximum(rd_x - lu_x, 0.0) * jnp.maximum(rd_y - lu_y, 0.0)
    union_area = area_p + area_t - inter_area
    iou = inter_area / (union_area + 1e-16)

    if loss_type == "iou":
        return 1.0 - iou * iou
    elif loss_type == "giou":
        enc_w = jnp.maximum(p_x1, t_x1) - jnp.minimum(p_x0, t_x0)
        enc_h = jnp.maximum(p_y1, t_y1) - jnp.minimum(p_y0, t_y0)
        enc_area = enc_w * enc_h
        # Padded (all-zero) lanes give 0/0 = NaN here.  'none' path slices
        # them off; reduced path masks them to zero before summing.
        giou = iou - (enc_area - union_area) / enc_area
        return 1.0 - jnp.clip(giou, -1.0, 1.0)
    raise ValueError(f"unknown loss_type: {loss_type}")


def _loss_plane_kernel(box_ref, out_ref, *, loss_type):
    # out_ref: (TILE_R, 128) f32 per-element loss.
    out_ref[...] = _box_loss(box_ref, loss_type=loss_type)


def _loss_psum_kernel(box_ref, psum_ref, *, loss_type, n_valid):
    # psum_ref: (1, 8, 128) f32 masked partial sums for this grid step.
    loss = _box_loss(box_ref, loss_type=loss_type)
    tile_r = loss.shape[0]
    row = lax.broadcasted_iota(jnp.int32, loss.shape, 0)
    lane = lax.broadcasted_iota(jnp.int32, loss.shape, 1)
    gidx = (pl.program_id(0) * tile_r + row) * 128 + lane
    masked = jnp.where(gidx < n_valid, loss, 0.0)   # also kills NaN in padding
    # Sublane-aligned partial reduction (pure VPU adds, no cross-lane work).
    psum_ref[0] = masked.reshape(tile_r // 8, 8, 128).sum(axis=0)


# ---------------------------------------------------------------------------
# Tiling / packing helpers
# ---------------------------------------------------------------------------
def _tiling(n, tile_rows):
    tile_rows = max(16, (int(tile_rows) // 16) * 16)
    r_needed = max(1, pl.cdiv(n, 128))
    # Aim for >= 2 grid steps (v7x megacore) while capping the tile size.
    target_tile = _round_up(pl.cdiv(r_needed, 2), 16)
    tile_r = max(16, min(tile_rows, target_tile))
    r_total = _round_up(r_needed, tile_r)
    return tile_r, r_total, r_total * 128, (r_total // tile_r,)


def _pack_planar(pred, target, n, r_total, n_pad):
    """(N,4)+(N,4) -> component-planar (8, r_total, 128) slab, native float dtype."""
    dt = jnp.promote_types(pred.dtype, target.dtype)
    if not jnp.issubdtype(dt, jnp.floating):
        dt = jnp.float32
    boxes = jnp.concatenate([pred.astype(dt), target.astype(dt)], axis=1)  # (N, 8)
    boxes = boxes.T                                                        # (8, N)
    boxes = jnp.pad(boxes, ((0, 0), (0, n_pad - n)))
    return boxes.reshape(8, r_total, 128)


def _compiler_params():
    return pltpu.CompilerParams(dimension_semantics=("parallel",))


# ---------------------------------------------------------------------------
# Public entry points
# ---------------------------------------------------------------------------
def my_iou_loss_planar(boxes, n, reduction="none", loss_type="iou"):
    """Kernel entry for producers that already emit the (8, r_total, 128) planar slab."""
    _, r_total, _ = boxes.shape
    tile_r = r_total  # caller controls tiling via r_total; single step here
    return _run(boxes, n, tile_r, r_total, r_total * 128, (1,), reduction, loss_type)


def _run(boxes, n, tile_r, r_total, n_pad, grid, reduction, loss_type):
    itemsize = jnp.dtype(boxes.dtype).itemsize
    in_spec = pl.BlockSpec((8, tile_r, 128), lambda i: (0, i, 0))

    if reduction in ("sum", "mean"):
        out_bytes = grid[0] * 8 * 128 * 4
        psums = pl.pallas_call(
            functools.partial(_loss_psum_kernel, loss_type=loss_type, n_valid=n),
            out_shape=jax.ShapeDtypeStruct((grid[0], 8, 128), jnp.float32),
            grid=grid,
            in_specs=[in_spec],
            out_specs=pl.BlockSpec((1, 8, 128), lambda i: (i, 0, 0)),
            compiler_params=_compiler_params(),
            cost_estimate=pl.CostEstimate(
                flops=40 * n_pad, transcendentals=0,
                bytes_accessed=8 * n_pad * itemsize + out_bytes),
        )(boxes)
        total = jnp.sum(psums, dtype=jnp.float32)
        if reduction == "mean":
            total = total / n
        return total

    out = pl.pallas_call(
        functools.partial(_loss_plane_kernel, loss_type=loss_type),
        out_shape=jax.ShapeDtypeStruct((r_total, 128), jnp.float32),
        grid=grid,
        in_specs=[in_spec],
        out_specs=pl.BlockSpec((tile_r, 128), lambda i: (i, 0)),
        compiler_params=_compiler_params(),
        cost_estimate=pl.CostEstimate(
            flops=40 * n_pad, transcendentals=0,
            bytes_accessed=8 * n_pad * itemsize + 4 * n_pad),
    )(boxes)
    return out.reshape(n_pad)[:n]


@functools.partial(jax.jit, static_argnames=("reduction", "loss_type", "tile_rows"))
def my_iou_loss(pred, target, reduction="none", loss_type="iou",
                tile_rows=_MAX_TILE_ROWS):
    """pred, target: (N, 4) arrays in cx,cy,w,h format (matching the PyTorch module)."""
    if loss_type not in ("iou", "giou"):
        raise ValueError(f"unknown loss_type: {loss_type}")
    assert pred.shape[0] == target.shape[0]
    assert pred.shape[1] == 4 and target.shape[1] == 4
    n = pred.shape[0]

    tile_r, r_total, n_pad, grid = _tiling(n, tile_rows)
    boxes = _pack_planar(pred, target, n, r_total, n_pad)
    return _run(boxes, n, tile_r, r_total, n_pad, grid, reduction, loss_type)


# ---------------------------------------------------------------------------
# Pure-JAX reference + tests
# ---------------------------------------------------------------------------
def _reference(pred, target, reduction="none", loss_type="iou"):
    b1 = pred.astype(jnp.float32)
    b2 = target.astype(jnp.float32)
    b1_xy = jnp.concatenate(
        [b1[:, :2] - b1[:, 2:] * 0.5, b1[:, :2] + b1[:, 2:] * 0.5], axis=-1)
    b2_xy = jnp.concatenate(
        [b2[:, :2] - b2[:, 2:] * 0.5, b2[:, :2] + b2[:, 2:] * 0.5], axis=-1)
    a1 = (b1_xy[:, 2] - b1_xy[:, 0]) * (b1_xy[:, 3] - b1_xy[:, 1])
    a2 = (b2_xy[:, 2] - b2_xy[:, 0]) * (b2_xy[:, 3] - b2_xy[:, 1])
    lu = jnp.maximum(b1_xy[:, :2], b2_xy[:, :2])
    rd = jnp.minimum(b1_xy[:, 2:], b2_xy[:, 2:])
    inter = jnp.maximum(rd - lu, 0.0)
    inter_area = inter[:, 0] * inter[:, 1]
    union = a1 + a2 - inter_area
    iou = inter_area / (union + 1e-16)
    if loss_type == "iou":
        loss = 1 - iou ** 2
    else:
        e_lu = jnp.minimum(b1_xy[:, :2], b2_xy[:, :2])
        e_rd = jnp.maximum(b1_xy[:, 2:], b2_xy[:, 2:])
        e_wh = e_rd - e_lu
        e_area = e_wh[:, 0] * e_wh[:, 1]
        giou = jnp.clip(iou - (e_area - union) / e_area, -1.0, 1.0)
        loss = 1 - giou
    if reduction == "mean":
        loss = jnp.mean(loss)
    elif reduction == "sum":
        loss = jnp.sum(loss)
    return loss


def _make_boxes(key, n):
    k1, k2, k3, k4 = jax.random.split(key, 4)
    pred_cxy = jax.random.uniform(k1, (n, 2), jnp.float32) * 10.0
    pred_wh = jax.random.uniform(k2, (n, 2), jnp.float32) * 3.0 + 0.5
    tgt_cxy = jax.random.uniform(k3, (n, 2), jnp.float32) * 10.0
    tgt_wh = jax.random.uniform(k4, (n, 2), jnp.float32) * 3.0 + 0.5
    pred = jnp.concatenate([pred_cxy, pred_wh], axis=-1)   # (N, 4) cx cy w h
    target = jnp.concatenate([tgt_cxy, tgt_wh], axis=-1)   # (N, 4) cx cy w h
    return pred, target


if __name__ == "__main__":
    key = jax.random.PRNGKey(0)
    k_small, k_mid, k_big = jax.random.split(key, 3)

    # --- small case (module default: reduction='none', loss_type='iou')
    n = 8
    pred, target = _make_boxes(k_small, n)
    out = jax.block_until_ready(my_iou_loss(pred, target))
    ref = _reference(pred, target)
    assert out.shape == (n,)
    assert jnp.allclose(out, ref, atol=1e-5, rtol=1e-5), (out, ref)

    # --- giou + fused sum path (padded NaN lanes must be masked in-kernel)
    out_g = jax.block_until_ready(
        my_iou_loss(pred, target, reduction="sum", loss_type="giou"))
    ref_g = _reference(pred, target, reduction="sum", loss_type="giou")
    assert jnp.isfinite(out_g)
    assert jnp.allclose(out_g, ref_g, atol=1e-4, rtol=1e-5), (out_g, ref_g)

    # --- fused mean path
    out_m = jax.block_until_ready(my_iou_loss(pred, target, reduction="mean"))
    ref_m = _reference(pred, target, reduction="mean")
    assert jnp.allclose(out_m, ref_m, atol=1e-5, rtol=1e-5), (out_m, ref_m)

    # --- multi-tile grid path (small tile_rows to exercise 3 grid steps + ragged tail)
    n_mid = 5000
    pred_m, target_m = _make_boxes(k_mid, n_mid)
    out_mid = jax.block_until_ready(my_iou_loss(pred_m, target_m, tile_rows=16))
    ref_mid = _reference(pred_m, target_m)
    assert out_mid.shape == (n_mid,)
    assert jnp.allclose(out_mid, ref_mid, atol=1e-5, rtol=1e-5)

    # --- default tiles with >=2-step guard + fused mean + giou masking on real padding
    n_big = 40000
    pred_b, target_b = _make_boxes(k_big, n_big)
    out_b = jax.block_until_ready(
        my_iou_loss(pred_b, target_b, reduction="mean", loss_type="giou"))
    ref_b = _reference(pred_b, target_b, reduction="mean", loss_type="giou")
    assert jnp.isfinite(out_b)
    assert jnp.allclose(out_b, ref_b, atol=1e-4, rtol=1e-4), (out_b, ref_b)

    # --- bf16 inputs stay bf16 on the DMA path, compute in f32 in-kernel
    pred_bf = pred.astype(jnp.bfloat16)
    target_bf = target.astype(jnp.bfloat16)
    out_bf = jax.block_until_ready(my_iou_loss(pred_bf, target_bf))
    ref_bf = _reference(pred_bf.astype(jnp.float32), target_bf.astype(jnp.float32))
    assert jnp.allclose(out_bf, ref_bf, atol=1e-5, rtol=1e-5), (out_bf, ref_bf)

    print("KERNEL_OK")
</pallas_src>

<mosaic_0001>
module attributes {stable_mosaic.version = 11 : i64} {
  func.func @_loss_plane_kernel(%arg0: i32, %arg1: memref<8x16x128xf32, #tpu.memory_space<vmem>>, %arg2: memref<16x128xf32, #tpu.memory_space<vmem>>) attributes {dimension_semantics = [#tpu.dimension_semantics<parallel>], iteration_bounds = array<i64: 1>, scalar_prefetch = 0 : i64, scratch_operands = 0 : i64, tpu.core_type = #tpu.core_type<tc>, window_params = [{transform_indices = @transform_0, window_bounds = array<i64: 8, 16, 128>}, {transform_indices = @transform_1, window_bounds = array<i64: 16, 128>}]} {
    %c0 = arith.constant 0 : index
    %c0_0 = arith.constant 0 : index
    %c0_1 = arith.constant 0 : index
    %0 = vector.load %arg1[%c0, %c0_0, %c0_1] : memref<8x16x128xf32, #tpu.memory_space<vmem>>, vector<1x16x128xf32>
    %1 = vector.shape_cast %0 : vector<1x16x128xf32> to vector<16x128xf32>
    %c1 = arith.constant 1 : index
    %c0_2 = arith.constant 0 : index
    %c0_3 = arith.constant 0 : index
    %2 = vector.load %arg1[%c1, %c0_2, %c0_3] : memref<8x16x128xf32, #tpu.memory_space<vmem>>, vector<1x16x128xf32>
    %3 = vector.shape_cast %2 : vector<1x16x128xf32> to vector<16x128xf32>
    %c2 = arith.constant 2 : index
    %c0_4 = arith.constant 0 : index
    %c0_5 = arith.constant 0 : index
    %4 = vector.load %arg1[%c2, %c0_4, %c0_5] : memref<8x16x128xf32, #tpu.memory_space<vmem>>, vector<1x16x128xf32>
    %5 = vector.shape_cast %4 : vector<1x16x128xf32> to vector<16x128xf32>
    %c3 = arith.constant 3 : index
    %c0_6 = arith.constant 0 : index
    %c0_7 = arith.constant 0 : index
    %6 = vector.load %arg1[%c3, %c0_6, %c0_7] : memref<8x16x128xf32, #tpu.memory_space<vmem>>, vector<1x16x128xf32>
    %7 = vector.shape_cast %6 : vector<1x16x128xf32> to vector<16x128xf32>
    %c4 = arith.constant 4 : index
    %c0_8 = arith.constant 0 : index
    %c0_9 = arith.constant 0 : index
    %8 = vector.load %arg1[%c4, %c0_8, %c0_9] : memref<8x16x128xf32, #tpu.memory_space<vmem>>, vector<1x16x128xf32>
    %9 = vector.shape_cast %8 : vector<1x16x128xf32> to vector<16x128xf32>
    %c5 = arith.constant 5 : index
    %c0_10 = arith.constant 0 : index
    %c0_11 = arith.constant 0 : index
    %10 = vector.load %arg1[%c5, %c0_10, %c0_11] : memref<8x16x128xf32, #tpu.memory_space<vmem>>, vector<1x16x128xf32>
    %11 = vector.shape_cast %10 : vector<1x16x128xf32> to vector<16x128xf32>
    %c6 = arith.constant 6 : index
    %c0_12 = arith.constant 0 : index
    %c0_13 = arith.constant 0 : index
    %12 = vector.load %arg1[%c6, %c0_12, %c0_13] : memref<8x16x128xf32, #tpu.memory_space<vmem>>, vector<1x16x128xf32>
    %13 = vector.shape_cast %12 : vector<1x16x128xf32> to vector<16x128xf32>
    %c7 = arith.constant 7 : index
    %c0_14 = arith.constant 0 : index
    %c0_15 = arith.constant 0 : index
    %14 = vector.load %arg1[%c7, %c0_14, %c0_15] : memref<8x16x128xf32, #tpu.memory_space<vmem>>, vector<1x16x128xf32>
    %15 = vector.shape_cast %14 : vector<1x16x128xf32> to vector<16x128xf32>
    %cst = arith.constant 5.000000e-01 : f32
    %16 = vector.broadcast %cst : f32 to vector<16x128xf32>
    %17 = arith.mulf %5, %16 : vector<16x128xf32>
    %cst_16 = arith.constant 5.000000e-01 : f32
    %18 = vector.broadcast %cst_16 : f32 to vector<16x128xf32>
    %19 = arith.mulf %7, %18 : vector<16x128xf32>
    %cst_17 = arith.constant 5.000000e-01 : f32
    %20 = vector.broadcast %cst_17 : f32 to vector<16x128xf32>
    %21 = arith.mulf %13, %20 : vector<16x128xf32>
    %cst_18 = arith.constant 5.000000e-01 : f32
    %22 = vector.broadcast %cst_18 : f32 to vector<16x128xf32>
    %23 = arith.mulf %15, %22 : vector<16x128xf32>
    %24 = arith.subf %1, %17 : vector<16x128xf32>
    %25 = arith.subf %3, %19 : vector<16x128xf32>
    %26 = arith.addf %1, %17 : vector<16x128xf32>
    %27 = arith.addf %3, %19 : vector<16x128xf32>
    %28 = arith.subf %9, %21 : vector<16x128xf32>
    %29 = arith.subf %11, %23 : vector<16x128xf32>
    %30 = arith.addf %9, %21 : vector<16x128xf32>
    %31 = arith.addf %11, %23 : vector<16x128xf32>
    %32 = arith.subf %26, %24 : vector<16x128xf32>
    %33 = arith.subf %27, %25 : vector<16x128xf32>
    %34 = arith.mulf %32, %33 : vector<16x128xf32>
    %35 = arith.subf %30, %28 : vector<16x128xf32>
    %36 = arith.subf %31, %29 : vector<16x128xf32>
    %37 = arith.mulf %35, %36 : vector<16x128xf32>
    %38 = arith.maximumf %24, %28 : vector<16x128xf32>
    %39 = arith.maximumf %25, %29 : vector<16x128xf32>
    %40 = arith.minimumf %26, %30 : vector<16x128xf32>
    %41 = arith.minimumf %27, %31 : vector<16x128xf32>
    %42 = arith.subf %40, %38 : vector<16x128xf32>
    %cst_19 = arith.constant 0.000000e+00 : f32
    %43 = vector.broadcast %cst_19 : f32 to vector<16x128xf32>
    %44 = arith.maximumf %42, %43 : vector<16x128xf32>
    %45 = arith.subf %41, %39 : vector<16x128xf32>
    %cst_20 = arith.constant 0.000000e+00 : f32
    %46 = vector.broadcast %cst_20 : f32 to vector<16x128xf32>
    %47 = arith.maximumf %45, %46 : vector<16x128xf32>
    %48 = arith.mulf %44, %47 : vector<16x128xf32>
    %49 = arith.addf %34, %37 : vector<16x128xf32>
    %50 = arith.subf %49, %48 : vector<16x128xf32>
    %cst_21 = arith.constant 1.000000e-16 : f32
    %51 = vector.broadcast %cst_21 : f32 to vector<16x128xf32>
    %52 = arith.addf %50, %51 : vector<16x128xf32>
    %53 = arith.divf %48, %52 : vector<16x128xf32>
    %54 = arith.mulf %53, %53 : vector<16x128xf32>
    %cst_22 = arith.constant 1.000000e+00 : f32
    %55 = vector.broadcast %cst_22 : f32 to vector<16x128xf32>
    %56 = arith.subf %55, %54 : vector<16x128xf32>
    %c0_23 = arith.constant 0 : index
    %c0_24 = arith.constant 0 : index
    %57 = vector.load %arg2[%c0_23, %c0_24] : memref<16x128xf32, #tpu.memory_space<vmem>>, vector<16x128xf32>
    tpu.vector_store %arg2[%c0_23, %c0_24], %56 {strides = array<i32>} : memref<16x128xf32, #tpu.memory_space<vmem>>, vector<16x128xf32>,
    return
  }
  func.func @transform_0(%arg0: i32) -> (i32, i32, i32) {
    %c0_i32 = arith.constant 0 : i32
    %c0_i32_0 = arith.constant 0 : i32
    %c0_i32_1 = arith.constant 0 : i32
    return %c0_i32, %arg0, %c0_i32_0 : i32, i32, i32
  }
  func.func @transform_1(%arg0: i32) -> (i32, i32) {
    %c0_i32 = arith.constant 0 : i32
    %c0_i32_0 = arith.constant 0 : i32
    return %arg0, %c0_i32 : i32, i32
  }
}

</mosaic_0001>

<llo_original>
// kernel: my_iou_loss.1
$region0: #{my_iou_loss.1}
  #allocation0 [shape = 'u32[]', space=smem, size = 0x4, offset = 0x4, fixed_abs, tag = 'smem constant byte address 0x4 - core index']
  #allocation1 [shape = 'u32[144,128]{1,0:T(1,128)}', space=vmem, size = 0x12000, scoped, tag = 'internal scratch']
  %s0 = inlined_call_operand.vmem [shape: f32[8,16,128], index: 0, kind: input, shape index: {}]
  %s1 = inlined_call_operand.vmem [shape: f32[16,128], index: 1, kind: output, shape index: {}]
  %s2 = sld [smem:[#allocation0]]
  $region14: #{my_iou_loss.1} parent=0
    _
  %s4 = ssub.s32 1, %s2
  %s5 = scalar_select 0, %s4, %s2
  // Predicated region
  $region2: #{my_iou_loss.1} parent=0 // pred_check
    _
  $region3: #{my_iou_loss.1} parent=0 // pred_check_branch
    %7 = sbr.rel (0) target = $region5
  $region4: #{my_iou_loss.1} parent=0 // pred_region
    _
  $region5: #{my_iou_loss.1} parent=0 // pred_fallthru
    _
  %v8 = vld [vmem:[%s0] sm:$0xff]
  %v9 = vld [vmem:[%s0 + $0x8] sm:$0xff]
  %s10 = scalar_lea.vmem %s0, 16
  %v11 = vld [vmem:[%s10] sm:$0xff]
  %v12 = vld [vmem:[%s10 + $0x8] sm:$0xff]
  %s13 = scalar_lea.vmem %s0, 32
  %v14 = vld [vmem:[%s13] sm:$0xff]
  %v15 = vld [vmem:[%s13 + $0x8] sm:$0xff]
  %s16 = scalar_lea.vmem %s0, 48
  %v17 = vld [vmem:[%s16] sm:$0xff]
  %v18 = vld [vmem:[%s16 + $0x8] sm:$0xff]
  %s19 = scalar_lea.vmem %s0, 64
  %v20 = vld [vmem:[%s19] sm:$0xff]
  %v21 = vld [vmem:[%s19 + $0x8] sm:$0xff]
  %s22 = scalar_lea.vmem %s0, 80
  %v23 = vld [vmem:[%s22] sm:$0xff]
  %v24 = vld [vmem:[%s22 + $0x8] sm:$0xff]
  %s25 = scalar_lea.vmem %s0, 96
  %v26 = vld [vmem:[%s25] sm:$0xff]
  %v27 = vld [vmem:[%s25 + $0x8] sm:$0xff]
  %s28 = scalar_lea.vmem %s0, 112
  %v29 = vld [vmem:[%s28] sm:$0xff]
  %v30 = vld [vmem:[%s28 + $0x8] sm:$0xff]
  %v31 = vmul.f32 %v14, 0.5
  %v32 = vmul.f32 %v15, 0.5
  %v33 = vmul.f32 %v17, 0.5
  %v34 = vmul.f32 %v18, 0.5
  %v35 = vmul.f32 %v26, 0.5
  %v36 = vmul.f32 %v27, 0.5
  %v37 = vmul.f32 %v29, 0.5
  %v38 = vmul.f32 %v30, 0.5
  %v39 = vsub.f32 %v8, %v31
  %v40 = vsub.f32 %v9, %v32
  %v41 = vsub.f32 %v11, %v33
  %v42 = vsub.f32 %v12, %v34
  %v43 = vadd.f32 %v8, %v31
  %v44 = vadd.f32 %v9, %v32
  %v45 = vadd.f32 %v11, %v33
  %v46 = vadd.f32 %v12, %v34
  %v47 = vsub.f32 %v20, %v35
  %v48 = vsub.f32 %v21, %v36
  %v49 = vsub.f32 %v23, %v37
  %v50 = vsub.f32 %v24, %v38
  %v51 = vadd.f32 %v20, %v35
  %v52 = vadd.f32 %v21, %v36
  %v53 = vadd.f32 %v23, %v37
  %v54 = vadd.f32 %v24, %v38
  %v55 = vsub.f32 %v43, %v39
  %v56 = vsub.f32 %v44, %v40
  %v57 = vsub.f32 %v45, %v41
  %v58 = vsub.f32 %v46, %v42
  %v59 = vmul.f32 %v55, %v57
  %v60 = vmul.f32 %v56, %v58
  %v61 = vsub.f32 %v51, %v47
  %v62 = vsub.f32 %v52, %v48
  %v63 = vsub.f32 %v53, %v49
  %v64 = vsub.f32 %v54, %v50
  %v65 = vmul.f32 %v61, %v63
  %v66 = vmul.f32 %v62, %v64
  %v67 = vmax.f32 %v39, %v47
  %v68 = vmax.f32 %v40, %v48
  %v69 = vmax.f32 %v41, %v49
  %v70 = vmax.f32 %v42, %v50
  %v71 = vmin.f32 %v43, %v51
  %v72 = vmin.f32 %v44, %v52
  %v73 = vmin.f32 %v45, %v53
  %v74 = vmin.f32 %v46, %v54
  %v75 = vsub.f32 %v71, %v67
  %v76 = vsub.f32 %v72, %v68
  %v77 = vmax.f32 %v75, 0.0
  %v78 = vmax.f32 %v76, 0.0
  %v79 = vsub.f32 %v73, %v69
  %v80 = vsub.f32 %v74, %v70
  %v81 = vmax.f32 %v79, 0.0
  %v82 = vmax.f32 %v80, 0.0
  %v83 = vmul.f32 %v77, %v81
  %v84 = vmul.f32 %v78, %v82
  %v85 = vadd.f32 %v59, %v65
  %v86 = vadd.f32 %v60, %v66
  %v87 = vsub.f32 %v85, %v83
  %v88 = vsub.f32 %v86, %v84
  %v89 = vadd.f32 %v87, 1e-16
  %v90 = vadd.f32 %v88, 1e-16
  %v91 = vrcp.pop %v89
  %v92 = vmul.f32 %v83, %v91
  %v93 = vrcp.pop %v90
  %v94 = vmul.f32 %v84, %v93
  %v95 = vmul.f32 %v92, %v92
  %v96 = vmul.f32 %v94, %v94
  %v97 = vsub.f32 1.0, %v95
  %v98 = vsub.f32 1.0, %v96
  %99 = vst [vmem:[%s1] sm:$0xff] %v97
  %100 = vst [vmem:[%s1 + $0x8] sm:$0xff] %v98
  // Predicated region
  $region6: #{my_iou_loss.1} parent=0 // pred_check
    _
  $region7: #{my_iou_loss.1} parent=0 // pred_check_branch
    %102 = sbr.rel (0) target = $region9
  $region8: #{my_iou_loss.1} parent=0 // pred_region
    _
  $region9: #{my_iou_loss.1} parent=0 // pred_fallthru
    _
  // Predicated region
  $region10: #{my_iou_loss.1} parent=0 // pred_check
    _
  $region11: #{my_iou_loss.1} parent=0 // pred_check_branch
    %104 = sbr.rel (0) target = $region13
  $region12: #{my_iou_loss.1} parent=0 // pred_region
    _
  $region13: #{my_iou_loss.1} parent=0 // pred_fallthru
    _

</llo_original>
